<compile_context>
chip_gen: v6e
topology: v6e:2x2x1
jax: 0.10.0
libtpu: 0.0.40
codegen_flags: <defaults>
</compile_context>

<pallas_src>
import functools
from math import sqrt

import jax
import jax.numpy as jnp
from jax.experimental import pallas as pl
from jax.experimental.pallas import tpu as pltpu


def _embedding_scale_kernel(x_ref, o_ref, *, scale: float):
    # Elementwise hot path: multiply the whole VMEM tile by sqrt(dim).
    o_ref[...] = x_ref[...] * scale


def _lane_dense_layout(total_elems: int):
    """Return (rows, cols, pad) with cols a multiple of 128 (lane-dense).

    pad is the number of trailing elements to append to the flattened array
    so that total_elems + pad == rows * cols.  Never produces a last dim
    below 128 (that path hits masked partial stores, ~4.5x slower).
    """
    for cols in (2048, 1024, 512, 256, 128):
        if total_elems % cols == 0:
            return total_elems // cols, cols, 0
    # No candidate divides the element count: pad the flat array and slice
    # the pad off after the kernel (pad <= cols - 1 elements).
    cols = 512 if total_elems >= 512 else 128
    padded = pl.cdiv(total_elems, cols) * cols
    return padded // cols, cols, padded - total_elems


def _tile_and_vmem_config():
    """Per-generation (tile_bytes, vmem_limit_bytes), with a safe fallback."""
    target_tile_bytes = 4 << 20   # safe everywhere (v5e scoped default 16 MiB)
    vmem_limit = 32 << 20
    try:
        vmem_cap = int(pltpu.get_tpu_info().vmem_capacity_bytes)
        if vmem_cap <= (64 << 20):
            # v7x-class: fast HBM makes per-step overhead proportionally
            # larger -> bigger tiles; keep 4x-tile footprint under 64 MiB.
            target_tile_bytes = 8 << 20
            vmem_limit = 48 << 20
        else:
            # v5e/v6e-class (128 MiB VMEM): 8 MiB tiles are free headroom.
            target_tile_bytes = 8 << 20
            vmem_limit = 64 << 20
    except Exception:
        pass
    return target_tile_bytes, vmem_limit


def embedding_forward(x: jax.Array, dim: int) -> jax.Array:
    """Equivalent of Embedding(dim).forward(x): x * sqrt(dim)."""
    assert x.shape[-1] == dim, f"last dim {x.shape[-1]} != dim {dim}"
    scale = float(sqrt(dim))  # plain Python float -> immediate in the kernel
    orig_shape = x.shape

    itemsize = jnp.dtype(x.dtype).itemsize
    total_elems = x.size
    rows, cols, pad = _lane_dense_layout(total_elems)

    x_flat = x.reshape(-1)
    if pad:
        x_flat = jnp.pad(x_flat, (0, pad))
    x2d = x_flat.reshape(rows, cols)

    # Tile rows sized by bytes, rounded to the dtype sublane multiple
    # (8 for 4B, 16 for 2B, 32 for 1B elements).
    sublane = max(8, 32 // itemsize)
    target_tile_bytes, vmem_limit = _tile_and_vmem_config()
    tile_rows = (target_tile_bytes // (cols * itemsize)) // sublane * sublane
    tile_rows = max(sublane, tile_rows)
    tile_rows = min(tile_rows, rows)  # either a sublane multiple or == rows

    # Megacore (v7x): if a >2 MiB input would run as a single grid step,
    # split it so both TensorCores get work.  Harmless on v5e/v6e.
    total_bytes = rows * cols * itemsize
    if pl.cdiv(rows, tile_rows) == 1 and rows >= 2 * sublane and total_bytes > (2 << 20):
        tile_rows = pl.cdiv(pl.cdiv(rows, 2), sublane) * sublane

    grid = (pl.cdiv(rows, tile_rows),)
    kernel = functools.partial(_embedding_scale_kernel, scale=scale)

    out2d = pl.pallas_call(
        kernel,
        out_shape=jax.ShapeDtypeStruct((rows, cols), x.dtype),
        grid_spec=pltpu.PrefetchScalarGridSpec(
            num_scalar_prefetch=0,
            grid=grid,
            in_specs=[pl.BlockSpec((tile_rows, cols), lambda i: (i, 0))],
            out_specs=pl.BlockSpec((tile_rows, cols), lambda i: (i, 0)),
        ),
        compiler_params=pltpu.CompilerParams(
            dimension_semantics=("parallel",),
            vmem_limit_bytes=vmem_limit,
        ),
        cost_estimate=pl.CostEstimate(
            flops=total_elems,
            transcendentals=0,
            bytes_accessed=2 * total_elems * itemsize,
        ),
    )(x2d)

    out_flat = out2d.reshape(-1)
    if pad:
        out_flat = out_flat[:total_elems]
    return out_flat.reshape(orig_shape)


if __name__ == "__main__":
    # Small shapes consistent with the module: (batch=2, seq=8, hidden=dim=32).
    batch, seq, dim = 2, 8, 32
    key = jax.random.PRNGKey(0)
    x = jax.random.normal(key, (batch, seq, dim), dtype=jnp.float32)

    y = embedding_forward(x, dim)
    y = jax.block_until_ready(y)

    # Reference check against plain JAX.
    y_ref = x * jnp.asarray(sqrt(dim), dtype=x.dtype)
    assert y.shape == x.shape and y.dtype == x.dtype
    assert jnp.allclose(y, y_ref, rtol=1e-6, atol=1e-6)

    # Also exercise the padding path (total elems not a multiple of 128).
    x_odd = jax.random.normal(key, (3, 5, dim), dtype=jnp.float32)
    y_odd = jax.block_until_ready(embedding_forward(x_odd, dim))
    assert jnp.allclose(y_odd, x_odd * jnp.asarray(sqrt(dim), x.dtype),
                        rtol=1e-6, atol=1e-6)

    print("KERNEL_OK")
</pallas_src>

<mosaic_0001>
module attributes {stable_mosaic.version = 11 : i64} {
  func.func @_embedding_scale_kernel(%arg0: i32, %arg1: memref<1x512xf32, #tpu.memory_space<vmem>>, %arg2: memref<1x512xf32, #tpu.memory_space<vmem>>) attributes {dimension_semantics = [#tpu.dimension_semantics<parallel>], iteration_bounds = array<i64: 1>, scalar_prefetch = 0 : i64, scratch_operands = 0 : i64, tpu.core_type = #tpu.core_type<tc>, window_params = [{transform_indices = @transform_0, window_bounds = array<i64: 1, 512>}, {transform_indices = @transform_1, window_bounds = array<i64: 1, 512>}]} {
    %c0 = arith.constant 0 : index
    %c0_0 = arith.constant 0 : index
    %0 = vector.load %arg1[%c0, %c0_0] : memref<1x512xf32, #tpu.memory_space<vmem>>, vector<1x512xf32>
    %cst = arith.constant 5.65685415 : f32
    %1 = vector.broadcast %cst : f32 to vector<1x512xf32>
    %2 = arith.mulf %0, %1 : vector<1x512xf32>
    %c0_1 = arith.constant 0 : index
    %c0_2 = arith.constant 0 : index
    %3 = vector.load %arg2[%c0_1, %c0_2] : memref<1x512xf32, #tpu.memory_space<vmem>>, vector<1x512xf32>
    tpu.vector_store %arg2[%c0_1, %c0_2], %2 {strides = array<i32>} : memref<1x512xf32, #tpu.memory_space<vmem>>, vector<1x512xf32>,
    return
  }
  func.func @transform_0(%arg0: i32) -> (i32, i32) {
    %c0_i32 = arith.constant 0 : i32
    %c0_i32_0 = arith.constant 0 : i32
    return %arg0, %c0_i32 : i32, i32
  }
  func.func @transform_1(%arg0: i32) -> (i32, i32) {
    %c0_i32 = arith.constant 0 : i32
    %c0_i32_0 = arith.constant 0 : i32
    return %arg0, %c0_i32 : i32, i32
  }
}

</mosaic_0001>

<llo_original>
// kernel: tpu_custom_call.1
$region0: #{tpu_custom_call.1}
  #allocation0 [shape = 'u32[]', space=smem, size = 0x4, offset = 0x4, fixed_abs, tag = 'smem constant byte address 0x4 - core index']
  #allocation1 [shape = 'u32[144,128]{1,0:T(1,128)}', space=vmem, size = 0x12000, scoped, tag = 'internal scratch']
  %s0 = inlined_call_operand.hbm [shape: f32[1,512], index: 0, kind: input, shape index: {}]
  %s1 = inlined_call_operand.hbm [shape: f32[1,512], index: 1, kind: output, shape index: {}]
  %s2 = sld [smem:[#allocation0]]
  $region18: #{tpu_custom_call.1} parent=0
    _
  %s4 = ssub.s32 1, %s2
  %s5 = scalar_select 0, %s4, %s2
  $region1: #{tpu_custom_call.1} parent=0
    #allocation2 [shape = 'u8[2048]{0}', space=vmem, size = 0x800, scoped, tag = 'input window, operand 0, single buffered']
    #allocation3 [shape = 's32[1]{0}', space=sflag, size = 0x4, scoped, tag = 'scoped memory for tpu_custom_call.1']
    #allocation4 [shape = 's32[1]{0}', space=sflag, size = 0x4, scoped, tag = 'scoped memory for tpu_custom_call.1']
    #allocation5 [shape = 'u8[2048]{0}', space=vmem, size = 0x800, scoped, tag = 'output window, operand 0, single buffered']
    %6 = vsyncpa [#allocation3], 0
    %7 = vsyncpa [#allocation4], 0
    // Predicated region
    $region2: #{tpu_custom_call.1} parent=1 // pred_check
      _
    $region3: #{tpu_custom_call.1} parent=1 // pred_check_branch
      %9 = sbr.rel (0) target = $region5
    $region4: #{tpu_custom_call.1} parent=1 // pred_region
      %s11 = ssub.s32 64, 64
      %12 = vsyncadd [#allocation3], %s11
      %s14 = sshll.u32 [#allocation2], 4
      %s15 = int_to_ptr.vmem [resolvable:$true] %s14
      %17 = dma.hbm_to_vmem [thread:$0]  %s0, 64, %s15, [#allocation3]
    $region5: #{tpu_custom_call.1} parent=1 // pred_fallthru
      _
    // Predicated region
    $region6: #{tpu_custom_call.1} parent=1 // pred_check
      _
    $region7: #{tpu_custom_call.1} parent=1 // pred_check_branch
      %19 = sbr.rel (0) target = $region9
    $region8: #{tpu_custom_call.1} parent=1 // pred_region
      %20 = dma.done [#allocation3], 64
    $region9: #{tpu_custom_call.1} parent=1 // pred_fallthru
      _
    %v21 = vld [vmem:[#allocation2] sm:$0xf]
    %v22 = vmul.f32 %v21, 5.656854
    %v23 = vlaneseq
    %vm24 = vcmp.ge.s32.totalorder %v23, 0
    %vm25 = vcmp.lt.s32.totalorder %v23, 512
    %vm26 = vmand %vm24, %vm25
    %27 = vst.msk [vmem:[#allocation5] sm:$0xf] %vm26, %v22
    // Predicated region
    $region10: #{tpu_custom_call.1} parent=1 // pred_check
      _
    $region11: #{tpu_custom_call.1} parent=1 // pred_check_branch
      %29 = sbr.rel (0) target = $region13
    $region12: #{tpu_custom_call.1} parent=1 // pred_region
      %s31 = ssub.s32 64, 64
      %32 = vsyncadd [#allocation4], %s31
      %s34 = sshll.u32 [#allocation5], 4
      %s35 = int_to_ptr.vmem [resolvable:$true] %s34
      %37 = dma.vmem_to_hbm [thread:$0]  %s35, 64, %s1, [#allocation4]
    $region13: #{tpu_custom_call.1} parent=1 // pred_fallthru
      _
    // Predicated region
    $region14: #{tpu_custom_call.1} parent=1 // pred_check
      _
    $region15: #{tpu_custom_call.1} parent=1 // pred_check_branch
      %39 = sbr.rel (0) target = $region17
    $region16: #{tpu_custom_call.1} parent=1 // pred_region
      %40 = dma.done [#allocation4], 64
    $region17: #{tpu_custom_call.1} parent=1 // pred_fallthru
      _
    %41 = vsyncpa [#allocation3], 1
    %42 = vsyncpa [#allocation4], 1

</llo_original>
